<compile_context>
chip_gen: v7x
topology: tpu7x:2x2x1
jax: 0.10.0
libtpu: 0.0.40
codegen_flags: <defaults>
</compile_context>

<pallas_src>
import jax
import jax.numpy as jnp
from jax.experimental import pallas as pl
from jax.experimental.pallas import tpu as pltpu


def _gaussian_vi_kernel(mu_ref, logvar_ref, gmask_ref, eps_ref, z_ref, lp_ref):
    """One row tile of the GaussianVI forward.

    mu_ref, logvar_ref : (1, L)   lane-packed parameter rows
    gmask_ref          : (L, G)   -0.5 * lane->logical-row membership mask
    eps_ref            : (T, L)   standard-normal draws for this tile
    z_ref              : (T, L)   output: reparameterized samples (packed rows)
    lp_ref             : (T, G)   output: log_prob_z0 per logical row (packed)
    """
    mu = mu_ref[...]                      # (1, L)
    # exp only on the (1, L) parameter row, NOT on the (T, L) broadcast.
    std = jnp.exp(0.5 * logvar_ref[...])  # (1, L)
    eps = eps_ref[...]                    # (T, L)

    # z = mu + std * eps  (parameter row broadcast over the tile rows)
    z_ref[...] = mu + std * eps

    # (z - zmu)/sigma == eps exactly, so log_prob_z0 = -0.5 * sum(eps^2) per row.
    # gmask carries both the -0.5 scale and the lane grouping; the reduction runs
    # on the MXU, which is otherwise idle in this elementwise kernel.
    sq = eps * eps
    lp_ref[...] = jnp.dot(sq, gmask_ref[...], preferred_element_type=jnp.float32)


def _pick_tile(n_rows, max_rows=2048):
    """Largest power-of-two row tile (<= max_rows, >= 8) dividing n_rows."""
    t = max_rows
    while t >= 8:
        if n_rows % t == 0:
            return t
        t //= 2
    return n_rows  # small / ragged n: single full-extent block


def gaussian_vi_forward(mu, logvar, eps):
    """GaussianVI.forward.

    mu, logvar : (D,) float32 parameters
    eps        : (n, D) float32 standard-normal draws (torch.randn equivalent)
    Returns (zmu, zlogvar, z, log_prob_z0) exactly like the PyTorch module.
    """
    n, D = eps.shape
    mu = mu.astype(jnp.float32)
    logvar = logvar.astype(jnp.float32)
    eps = eps.astype(jnp.float32)

    # ---- lane-dense packing: (n, D) -> (n*D/128, 128) when D divides 128 ----
    if D <= 128 and 128 % D == 0 and (n * D) % 128 == 0:
        L = 128
        G = L // D        # logical rows per packed row
    else:
        L = D
        G = 1

    n_rows = (n * D) // L
    mu_row = jnp.tile(mu, G).reshape(1, L)
    logvar_row = jnp.tile(logvar, G).reshape(1, L)
    eps_rows = eps.reshape(n_rows, L)

    # -0.5 * membership mask: lane l belongs to logical row (l // D) within a packed row.
    lane_grp = jnp.arange(L) // D
    gmask = (-0.5) * (lane_grp[:, None] == jnp.arange(G)[None, :]).astype(jnp.float32)

    # ---- row-tiled grid (double-buffered by BlockSpec, ~<=1 MiB per buffer) ----
    tile = _pick_tile(n_rows)
    grid = (n_rows // tile,)

    z_rows, lp_rows = pl.pallas_call(
        _gaussian_vi_kernel,
        out_shape=(
            jax.ShapeDtypeStruct((n_rows, L), jnp.float32),   # z (packed rows)
            jax.ShapeDtypeStruct((n_rows, G), jnp.float32),   # log_prob_z0 (packed)
        ),
        grid=grid,
        in_specs=[
            pl.BlockSpec((1, L), lambda i: (0, 0)),       # mu row (reused every tile)
            pl.BlockSpec((1, L), lambda i: (0, 0)),       # logvar row
            pl.BlockSpec((L, G), lambda i: (0, 0)),       # -0.5 * group mask
            pl.BlockSpec((tile, L), lambda i: (i, 0)),    # eps tile
        ],
        out_specs=(
            pl.BlockSpec((tile, L), lambda i: (i, 0)),    # z tile (full-lane stores)
            pl.BlockSpec((tile, G), lambda i: (i, 0)),    # lp tile
        ),
        compiler_params=pltpu.CompilerParams(
            dimension_semantics=("parallel",),            # shard tiles across TCs (v7x)
        ),
    )(mu_row, logvar_row, gmask, eps_rows)

    z = z_rows.reshape(n, D)
    log_prob_z0 = lp_rows.reshape(n)

    # zmu / zlogvar are pure broadcasts of the parameters; keep them out of the
    # kernel (no HBM write traffic for them from Pallas).
    zmu = jnp.broadcast_to(mu, (n, D))
    zlogvar = jnp.broadcast_to(logvar, (n, D))
    return zmu, zlogvar, z, log_prob_z0


if __name__ == "__main__":
    # Toy shapes consistent with the module (D latent dims, n samples). Note: at
    # this size plain jitted JAX would beat the Pallas launch overhead; the kernel
    # is intended for large n (thousands of rows), where it is HBM-bound.
    D = 32
    n = 8

    key = jax.random.PRNGKey(0)
    k_mu, k_lv, k_eps = jax.random.split(key, 3)

    # nn.init.normal_ equivalent parameter init.
    mu = jax.random.normal(k_mu, (D,), dtype=jnp.float32)
    logvar = jax.random.normal(k_lv, (D,), dtype=jnp.float32)
    # torch.randn equivalent draws (done outside the kernel, like the module).
    eps = jax.random.normal(k_eps, (n, D), dtype=jnp.float32)

    zmu, zlogvar, z, log_prob_z0 = gaussian_vi_forward(mu, logvar, eps)
    jax.block_until_ready((zmu, zlogvar, z, log_prob_z0))

    # Plain-JAX reference mirroring the PyTorch module literally.
    sigma = jnp.exp(0.5 * logvar)
    zmu_r = jnp.broadcast_to(mu, (n, D))
    zlv_r = jnp.broadcast_to(logvar, (n, D))
    z_r = zmu_r + jnp.exp(0.5 * zlv_r) * eps
    lp_r = jnp.sum(-0.5 * ((z_r - zmu_r) / sigma) ** 2, axis=1)

    assert zmu.shape == (n, D) and zlogvar.shape == (n, D)
    assert z.shape == (n, D) and log_prob_z0.shape == (n,)
    assert jnp.allclose(zmu, zmu_r, atol=1e-5)
    assert jnp.allclose(zlogvar, zlv_r, atol=1e-5)
    assert jnp.allclose(z, z_r, atol=1e-5)
    assert jnp.allclose(log_prob_z0, lp_r, atol=1e-4, rtol=1e-4)

    print("KERNEL_OK")
</pallas_src>

<mosaic_0001>
module attributes {stable_mosaic.version = 11 : i64} {
  func.func @_gaussian_vi_kernel(%arg0: i32, %arg1: memref<1x128xf32, #tpu.memory_space<vmem>>, %arg2: memref<1x128xf32, #tpu.memory_space<vmem>>, %arg3: memref<128x4xf32, #tpu.memory_space<vmem>>, %arg4: memref<2x128xf32, #tpu.memory_space<vmem>>, %arg5: memref<2x128xf32, #tpu.memory_space<vmem>>, %arg6: memref<2x4xf32, #tpu.memory_space<vmem>>) attributes {dimension_semantics = [#tpu.dimension_semantics<parallel>], iteration_bounds = array<i64: 1>, scalar_prefetch = 0 : i64, scratch_operands = 0 : i64, tpu.core_type = #tpu.core_type<tc>, window_params = [{pipeline_mode = #tpu.pipeline_mode<synchronous>, transform_indices = @transform_0, window_bounds = array<i64: 1, 128>}, {pipeline_mode = #tpu.pipeline_mode<synchronous>, transform_indices = @transform_1, window_bounds = array<i64: 1, 128>}, {pipeline_mode = #tpu.pipeline_mode<synchronous>, transform_indices = @transform_2, window_bounds = array<i64: 128, 4>}, {transform_indices = @transform_3, window_bounds = array<i64: 2, 128>}, {transform_indices = @transform_4, window_bounds = array<i64: 2, 128>}, {transform_indices = @transform_5, window_bounds = array<i64: 2, 4>}]} {
    %c0 = arith.constant 0 : index
    %c0_0 = arith.constant 0 : index
    %0 = vector.load %arg1[%c0, %c0_0] : memref<1x128xf32, #tpu.memory_space<vmem>>, vector<1x128xf32>
    %c0_1 = arith.constant 0 : index
    %c0_2 = arith.constant 0 : index
    %1 = vector.load %arg2[%c0_1, %c0_2] : memref<1x128xf32, #tpu.memory_space<vmem>>, vector<1x128xf32>
    %cst = arith.constant 5.000000e-01 : f32
    %2 = vector.broadcast %cst : f32 to vector<1x128xf32>
    %3 = arith.mulf %2, %1 : vector<1x128xf32>
    %4 = math.exp %3 : vector<1x128xf32>
    %c0_3 = arith.constant 0 : index
    %c0_4 = arith.constant 0 : index
    %5 = vector.load %arg4[%c0_3, %c0_4] : memref<2x128xf32, #tpu.memory_space<vmem>>, vector<2x128xf32>
    %6 = vector.broadcast %4 : vector<1x128xf32> to vector<2x128xf32>
    %7 = arith.mulf %6, %5 : vector<2x128xf32>
    %8 = vector.broadcast %0 : vector<1x128xf32> to vector<2x128xf32>
    %9 = arith.addf %8, %7 : vector<2x128xf32>
    %c0_5 = arith.constant 0 : index
    %c0_6 = arith.constant 0 : index
    %10 = vector.load %arg5[%c0_5, %c0_6] : memref<2x128xf32, #tpu.memory_space<vmem>>, vector<2x128xf32>
    tpu.vector_store %arg5[%c0_5, %c0_6], %9 {strides = array<i32>} : memref<2x128xf32, #tpu.memory_space<vmem>>, vector<2x128xf32>,
    %11 = arith.mulf %5, %5 : vector<2x128xf32>
    %c0_7 = arith.constant 0 : index
    %c0_8 = arith.constant 0 : index
    %12 = vector.load %arg3[%c0_7, %c0_8] : memref<128x4xf32, #tpu.memory_space<vmem>>, vector<128x4xf32>
    %cst_9 = arith.constant dense<0.000000e+00> : vector<2x4xf32>
    %13 = tpu.matmul %11, %12, %cst_9 {dimension_numbers = #tpu.dot_dimension_numbers<[1], [0], [0], [1], [0, 0, 1, 1], [], []>} : vector<2x128xf32>, vector<128x4xf32>, vector<2x4xf32> -> vector<2x4xf32>
    %c0_10 = arith.constant 0 : index
    %c0_11 = arith.constant 0 : index
    %14 = vector.load %arg6[%c0_10, %c0_11] : memref<2x4xf32, #tpu.memory_space<vmem>>, vector<2x4xf32>
    tpu.vector_store %arg6[%c0_10, %c0_11], %13 {strides = array<i32>} : memref<2x4xf32, #tpu.memory_space<vmem>>, vector<2x4xf32>,
    return
  }
  func.func @transform_0(%arg0: i32) -> (i32, i32) {
    %c0_i32 = arith.constant 0 : i32
    %c0_i32_0 = arith.constant 0 : i32
    %c0_i32_1 = arith.constant 0 : i32
    return %c0_i32, %c0_i32_0 : i32, i32
  }
  func.func @transform_1(%arg0: i32) -> (i32, i32) {
    %c0_i32 = arith.constant 0 : i32
    %c0_i32_0 = arith.constant 0 : i32
    %c0_i32_1 = arith.constant 0 : i32
    return %c0_i32, %c0_i32_0 : i32, i32
  }
  func.func @transform_2(%arg0: i32) -> (i32, i32) {
    %c0_i32 = arith.constant 0 : i32
    %c0_i32_0 = arith.constant 0 : i32
    %c0_i32_1 = arith.constant 0 : i32
    return %c0_i32, %c0_i32_0 : i32, i32
  }
  func.func @transform_3(%arg0: i32) -> (i32, i32) {
    %c0_i32 = arith.constant 0 : i32
    %c0_i32_0 = arith.constant 0 : i32
    return %arg0, %c0_i32 : i32, i32
  }
  func.func @transform_4(%arg0: i32) -> (i32, i32) {
    %c0_i32 = arith.constant 0 : i32
    %c0_i32_0 = arith.constant 0 : i32
    return %arg0, %c0_i32 : i32, i32
  }
  func.func @transform_5(%arg0: i32) -> (i32, i32) {
    %c0_i32 = arith.constant 0 : i32
    %c0_i32_0 = arith.constant 0 : i32
    return %arg0, %c0_i32 : i32, i32
  }
}

</mosaic_0001>

<llo_original>
// kernel: tpu_custom_call.1
$region0: #{tpu_custom_call.1}
  #allocation0 [shape = 'u32[]', space=smem, size = 0x4, offset = 0x4, fixed_abs, tag = 'smem constant byte address 0x4 - core index']
  #allocation1 [shape = 'u32[144,128]{1,0:T(1,128)}', space=vmem, size = 0x12000, scoped, tag = 'internal scratch']
  %s0 = inlined_call_operand.vmem [shape: f32[1,128], index: 0, kind: input, shape index: {}]
  %s1 = inlined_call_operand.vmem [shape: f32[1,128], index: 1, kind: input, shape index: {}]
  %s2 = inlined_call_operand.vmem [shape: f32[128,4], index: 2, kind: input, shape index: {}]
  %s3 = inlined_call_operand.vmem [shape: f32[2,128], index: 3, kind: input, shape index: {}]
  %s4 = inlined_call_operand.hbm [shape: f32[2,128], index: 4, kind: output, shape index: {0}]
  %s5 = inlined_call_operand.hbm [shape: f32[2,4], index: 5, kind: output, shape index: {1}]
  %6 = xla_tuple %s4, %s5
  %s7 = sld [smem:[#allocation0]]
  $region34: #{tpu_custom_call.1} parent=0
    _
  %s9 = ssub.s32 1, %s7
  %s10 = scalar_select 0, %s9, %s7
  $region1: #{tpu_custom_call.1} parent=0
    #allocation2 [shape = 'u8[1024]{0}', space=vmem, size = 0x400, scoped, tag = 'output window, operand 0, single buffered']
    #allocation3 [shape = 's32[1]{0}', space=sflag, size = 0x4, scoped, tag = 'scoped memory for tpu_custom_call.1']
    #allocation4 [shape = 'u8[1024]{0}', space=vmem, size = 0x400, scoped, tag = 'output window, operand 1, single buffered']
    #allocation5 [shape = 's32[1]{0}', space=sflag, size = 0x4, scoped, tag = 'scoped memory for tpu_custom_call.1']
    %11 = vsyncpa [#allocation3], 0
    %12 = vsyncpa [#allocation5], 0
    // Predicated region
    $region2: #{tpu_custom_call.1} parent=1 // pred_check
      _
    $region3: #{tpu_custom_call.1} parent=1 // pred_check_branch
      %14 = sbr.rel (0) target = $region5
    $region4: #{tpu_custom_call.1} parent=1 // pred_region
      _
    $region5: #{tpu_custom_call.1} parent=1 // pred_fallthru
      _
    // Predicated region
    $region6: #{tpu_custom_call.1} parent=1 // pred_check
      _
    $region7: #{tpu_custom_call.1} parent=1 // pred_check_branch
      %16 = sbr.rel (0) target = $region9
    $region8: #{tpu_custom_call.1} parent=1 // pred_region
      _
    $region9: #{tpu_custom_call.1} parent=1 // pred_fallthru
      _
    // Predicated region
    $region10: #{tpu_custom_call.1} parent=1 // pred_check
      _
    $region11: #{tpu_custom_call.1} parent=1 // pred_check_branch
      %18 = sbr.rel (0) target = $region13
    $region12: #{tpu_custom_call.1} parent=1 // pred_region
      _
    $region13: #{tpu_custom_call.1} parent=1 // pred_fallthru
      _
    // Predicated region
    $region14: #{tpu_custom_call.1} parent=1 // pred_check
      _
    $region15: #{tpu_custom_call.1} parent=1 // pred_check_branch
      %20 = sbr.rel (0) target = $region17
    $region16: #{tpu_custom_call.1} parent=1 // pred_region
      _
    $region17: #{tpu_custom_call.1} parent=1 // pred_fallthru
      _
    %v21 = vld [vmem:[%s0] sm:$0x1]
    %v22 = vld [vmem:[%s1] sm:$0x1]
    %v23 = vmul.f32 %v22, 0.5
    %v24 = vmul.f32 %v23, 1.442695
    %v25 = vpow.pop %v24
    %v26 = vld [vmem:[%s3] sm:$0x3]
    %v28 = vlaneseq
    %v29 = vshrl.u32 %v28, 7
    %v30 = vsub.s32 0, %v29
    %v31 = vrot.slane %v25, %v30
    %v33 = vmul.f32 %v31, %v26
    %v35 = vlaneseq
    %v36 = vshrl.u32 %v35, 7
    %v37 = vsub.s32 0, %v36
    %v38 = vrot.slane %v21, %v37
    %v40 = vadd.f32 %v38, %v33
    %41 = vst [vmem:[#allocation2] sm:$0x3] %v40
    %v42 = vmul.f32 %v26, %v26
    %v43 = vld [vmem:[%s2] sm:$0xff]
    %v44 = vld [vmem:[%s2 + $0x8] sm:$0xff]
    %v45 = vld [vmem:[%s2 + $0x10] sm:$0xff]
    %v46 = vld [vmem:[%s2 + $0x18] sm:$0xff]
    %v47 = vld [vmem:[%s2 + $0x20] sm:$0xff]
    %v48 = vld [vmem:[%s2 + $0x28] sm:$0xff]
    %v49 = vld [vmem:[%s2 + $0x30] sm:$0xff]
    %v50 = vld [vmem:[%s2 + $0x38] sm:$0xff]
    %v51 = vld [vmem:[%s2 + $0x40] sm:$0xff]
    %v52 = vld [vmem:[%s2 + $0x48] sm:$0xff]
    %v53 = vld [vmem:[%s2 + $0x50] sm:$0xff]
    %v54 = vld [vmem:[%s2 + $0x58] sm:$0xff]
    %v55 = vld [vmem:[%s2 + $0x60] sm:$0xff]
    %v56 = vld [vmem:[%s2 + $0x68] sm:$0xff]
    %v57 = vld [vmem:[%s2 + $0x70] sm:$0xff]
    %v58 = vld [vmem:[%s2 + $0x78] sm:$0xff]
    %59 = vmatprep.subr.mxu0 0.0
    %60 = vmatpush1.msra.mxu0 %v43
    %61 = vmatprep.subr.mxu0 0.0
    %62 = vmatpush1.msra.mxu0 %v44
    %63 = vmatprep.subr.mxu0 0.0
    %64 = vmatpush1.msra.mxu0 %v45
    %65 = vmatprep.subr.mxu0 0.0
    %66 = vmatpush1.msra.mxu0 %v46
    %67 = vmatprep.subr.mxu0 0.0
    %68 = vmatpush1.msra.mxu0 %v47
    %69 = vmatprep.subr.mxu0 0.0
    %70 = vmatpush1.msra.mxu0 %v48
    %71 = vmatprep.subr.mxu0 0.0
    %72 = vmatpush1.msra.mxu0 %v49
    %73 = vmatprep.subr.mxu0 0.0
    %74 = vmatpush1.msra.mxu0 %v50
    %75 = vmatprep.subr.mxu0 0.0
    %76 = vmatpush1.msra.mxu0 %v51
    %77 = vmatprep.subr.mxu0 0.0
    %78 = vmatpush1.msra.mxu0 %v52
    %79 = vmatprep.subr.mxu0 0.0
    %80 = vmatpush1.msra.mxu0 %v53
    %81 = vmatprep.subr.mxu0 0.0
    %82 = vmatpush1.msra.mxu0 %v54
    %83 = vmatprep.subr.mxu0 0.0
    %84 = vmatpush1.msra.mxu0 %v55
    %85 = vmatprep.subr.mxu0 0.0
    %86 = vmatpush1.msra.mxu0 %v56
    %87 = vmatprep.subr.mxu0 0.0
    %88 = vmatpush1.msra.mxu0 %v57
    %89 = vmatprep.subr.mxu0 0.0
    %90 = vmatpush1.msra.mxu0 %v58
    %91 = vmatprep.subr.mxu0 0.0
    %92 = vmatpush1.msra.mxu0 0.0
    %93 = vmatprep.subr.mxu0 0.0
    %94 = vmatpush1.msra.mxu0 0.0
    %95 = vmatprep.subr.mxu0 0.0
    %96 = vmatpush1.msra.mxu0 0.0
    %97 = vmatprep.subr.mxu0 0.0
    %98 = vmatpush1.msra.mxu0 0.0
    %99 = vmatprep.subr.mxu0 0.0
    %100 = vmatpush1.msra.mxu0 0.0
    %101 = vmatprep.subr.mxu0 0.0
    %102 = vmatpush1.msra.mxu0 0.0
    %103 = vmatprep.subr.mxu0 0.0
    %104 = vmatpush1.msra.mxu0 0.0
    %105 = vmatprep.subr.mxu0 0.0
    %106 = vmatpush1.msra.mxu0 0.0
    %107 = vmatprep.subr.mxu0 0.0
    %108 = vmatpush1.msra.mxu0 0.0
    %109 = vmatprep.subr.mxu0 0.0
    %110 = vmatpush1.msra.mxu0 0.0
    %111 = vmatprep.subr.mxu0 0.0
    %112 = vmatpush1.msra.mxu0 0.0
    %113 = vmatprep.subr.mxu0 0.0
    %114 = vmatpush1.msra.mxu0 0.0
    %115 = vmatprep.subr.mxu0 0.0
    %116 = vmatpush1.msra.mxu0 0.0
    %117 = vmatprep.subr.mxu0 0.0
    %118 = vmatpush1.msra.mxu0 0.0
    %119 = vmatprep.subr.mxu0 0.0
    %120 = vmatpush1.msra.mxu0 0.0
    %121 = vmatprep.subr.mxu0 0.0
    %122 = vmatpush1.msra.mxu0 0.0
    %123 = vmatprep.mubr.f32.mxu0 0.0
    %124 = vmatmul.mubr.f32.gmra.mrb[0].mxu0 %v42
    %v125 = vpop.f32.mrb[0].mxu0
    %v126 = vadd.f32 0.0, %v125
    %v127 = vpop.f32.mrb[0].mxu0
    %128 = vdwg.mxu0
    %vm129 = vcmask 25600
    %130 = vst.msk [vmem:[#allocation4] sm:$0x3] %vm129, %v126
    // Predicated region
    $region18: #{tpu_custom_call.1} parent=1 // pred_check
      _
    $region19: #{tpu_custom_call.1} parent=1 // pred_check_branch
      %132 = sbr.rel (0) target = $region21
    $region20: #{tpu_custom_call.1} parent=1 // pred_region
      %s134 = ssub.s32 32, 32
      %135 = vsyncadd [#allocation3], %s134
      %s137 = sshll.u32 [#allocation2], 4
      %s138 = int_to_ptr.vmem [resolvable:$true] %s137
      %140 = dma.vmem_to_hbm [thread:$0]  %s138, 32, %s4, [#allocation3]
    $region21: #{tpu_custom_call.1} parent=1 // pred_fallthru
      _
    // Predicated region
    $region22: #{tpu_custom_call.1} parent=1 // pred_check
      _
    $region23: #{tpu_custom_call.1} parent=1 // pred_check_branch
      %142 = sbr.rel (0) target = $region25
    $region24: #{tpu_custom_call.1} parent=1 // pred_region
      %s144 = ssub.s32 32, 32
      %145 = vsyncadd [#allocation5], %s144
      %s147 = sshll.u32 [#allocation4], 4
      %s148 = int_to_ptr.vmem [resolvable:$true] %s147
      %150 = dma.vmem_to_hbm [thread:$0]  %s148, 32, %s5, [#allocation5]
    $region25: #{tpu_custom_call.1} parent=1 // pred_fallthru
      _
    // Predicated region
    $region26: #{tpu_custom_call.1} parent=1 // pred_check
      _
    $region27: #{tpu_custom_call.1} parent=1 // pred_check_branch
      %152 = sbr.rel (0) target = $region29
    $region28: #{tpu_custom_call.1} parent=1 // pred_region
      %153 = dma.done [#allocation3], 32
    $region29: #{tpu_custom_call.1} parent=1 // pred_fallthru
      _
    // Predicated region
    $region30: #{tpu_custom_call.1} parent=1 // pred_check
      _
    $region31: #{tpu_custom_call.1} parent=1 // pred_check_branch
      %155 = sbr.rel (0) target = $region33
    $region32: #{tpu_custom_call.1} parent=1 // pred_region
      %156 = dma.done [#allocation5], 32
    $region33: #{tpu_custom_call.1} parent=1 // pred_fallthru
      _
    %157 = vsyncpa [#allocation3], 1
    %158 = vsyncpa [#allocation5], 1

</llo_original>
